<compile_context>
chip_gen: v6e
topology: v6e:2x2x1
jax: 0.10.0
libtpu: 0.0.40
codegen_flags: <defaults>
</compile_context>

<pallas_src>
import jax
import jax.numpy as jnp
from jax import lax
from jax.experimental import pallas as pl
from jax.experimental.pallas import tpu as pltpu


# ---------------------------------------------------------------------------
# Kernel
# ---------------------------------------------------------------------------
def _gates_to_h(gates, H):
    """gates: (3H, TB) f32 pre-activations in (i, g, o) order (sublane-stacked).
    Returns h = o * tanh(i * g) of shape (H, TB) f32.
    (f * c_prev == 0 exactly because the initial cell state is zero, so the
    forget gate was pruned on the host.)"""
    i = jax.nn.sigmoid(gates[0 * H:1 * H])
    g = jnp.tanh(gates[1 * H:2 * H])
    o = jax.nn.sigmoid(gates[2 * H:3 * H])
    return o * jnp.tanh(i * g)


def rnn_kernel(x_ref, w1_ref, b1_ref, w2_ref, b2_ref, w3_ref, b3_ref, out_ref):
    # In-kernel bf16 cast of the activation tile (free VPU op; avoids a
    # separate host-side cast kernel and its HBM round trip).
    x_bf = x_ref[...].astype(jnp.bfloat16)                      # (TB, D)

    # Layer 1: contract d_in of W (dim 1) with d_in of x (dim 1) -> (3H1, TB).
    # Avoids transposing x; one fused MXU op for all three kept gates.
    g1 = lax.dot_general(w1_ref[...], x_bf, (((1,), (1,)), ((), ())),
                         preferred_element_type=jnp.float32) + b1_ref[...]
    h1 = _gates_to_h(g1, w1_ref.shape[0] // 3)                  # (H1, TB) f32

    # Layers 2/3: standard (3H, H_prev) @ (H_prev, TB) matmuls, bf16 in / f32 acc.
    g2 = jnp.dot(w2_ref[...], h1.astype(jnp.bfloat16),
                 preferred_element_type=jnp.float32) + b2_ref[...]
    h2 = _gates_to_h(g2, w2_ref.shape[0] // 3)                  # (H2, TB) f32

    g3 = jnp.dot(w3_ref[...], h2.astype(jnp.bfloat16),
                 preferred_element_type=jnp.float32) + b3_ref[...]
    h3 = _gates_to_h(g3, w3_ref.shape[0] // 3)                  # (H3, TB) f32

    # Single XLU transpose back to batch-major; the output block covers the
    # full row range so the HBM write-back is one contiguous DMA per tile.
    out_ref[...] = h3.T.astype(out_ref.dtype)                   # (TB, H3)


# ---------------------------------------------------------------------------
# Wrapper
# ---------------------------------------------------------------------------
def _num_batch_tiles(B):
    """1 tile by default (amortize the ~0.35 us per-grid-step overhead);
    2 tiles on v7x-like devices so both TensorCores get a tile; more tiles only
    for very large batches (keep per-tile rows <= ~2048)."""
    base = 1
    try:
        kind = jax.devices()[0].device_kind.lower()
        if ("v7" in kind) or ("7x" in kind) or ("tpu7" in kind):
            base = 2
    except Exception:
        pass
    n = max(base, -(-B // 2048))
    if base == 2 and n % 2:
        n += 1
    return n


def rnn_forward(x, kparams, *, num_tiles=None):
    """x: (B, input_dim) f32.  kparams: list of 3 dicts
       {'w': (3H, d_in) bf16, 'b': (3H, 1) f32}.  Returns h3: (B, H3) f32."""
    B, D = x.shape
    H_out = kparams[2]["w"].shape[0] // 3

    n = num_tiles if num_tiles is not None else _num_batch_tiles(B)
    # Pad the batch so it splits into n sublane-aligned (x8) row tiles.
    mult = n * 8
    Bp = -(-B // mult) * mult
    x_p = x if Bp == B else jnp.pad(x, ((0, Bp - B), (0, 0)))
    tile_b = Bp // n

    const = lambda i: (0, 0)            # weights/biases: DMA'd once, VMEM-resident
    in_specs = [pl.BlockSpec((tile_b, D), lambda i: (i, 0))]
    for layer in kparams:
        in_specs.append(pl.BlockSpec(layer["w"].shape, const))
        in_specs.append(pl.BlockSpec(layer["b"].shape, const))

    out = pl.pallas_call(
        rnn_kernel,
        out_shape=jax.ShapeDtypeStruct((Bp, H_out), jnp.float32),
        grid=(n,),
        in_specs=in_specs,
        out_specs=pl.BlockSpec((tile_b, H_out), lambda i: (i, 0)),
        compiler_params=pltpu.CompilerParams(
            dimension_semantics=("parallel",)),   # shard batch tiles across TCs (v7x)
    )(x_p,
      kparams[0]["w"], kparams[0]["b"],
      kparams[1]["w"], kparams[1]["b"],
      kparams[2]["w"], kparams[2]["b"])
    return out if Bp == B else out[:B]


# ---------------------------------------------------------------------------
# Parameters: raw PyTorch-style LSTMCell params + kernel-layout conversion
# ---------------------------------------------------------------------------
def init_raw_params(key, input_dim, num_units):
    """PyTorch LSTMCell init: every tensor ~ U(-1/sqrt(H), 1/sqrt(H)).
    Raw layout: W_ih (4H, d_in), W_hh (4H, H), b_ih (4H,), b_hh (4H,)."""
    raw = []
    d_in = input_dim
    for h in num_units:
        k = float(h) ** -0.5
        key, k1, k2, k3, k4 = jax.random.split(key, 5)
        raw.append({
            "w_ih": jax.random.uniform(k1, (4 * h, d_in), jnp.float32, -k, k),
            "w_hh": jax.random.uniform(k2, (4 * h, h), jnp.float32, -k, k),
            "b_ih": jax.random.uniform(k3, (4 * h,), jnp.float32, -k, k),
            "b_hh": jax.random.uniform(k4, (4 * h,), jnp.float32, -k, k),
        })
        d_in = h
    return raw


def convert_params_for_kernel(raw_params):
    """PyTorch layout -> kernel layout.

    WARNING: this folding is exact ONLY for a single step with zero initial
    (h, c) — h @ W_hh.T == 0 (W_hh dropped) and the forget gate only multiplies
    c == 0 (its rows pruned).  Do NOT reuse for multi-timestep recurrence.

    Kept gates (i, g, o) are stacked along the leading (sublane) axis:
      w: (3H, d_in) bf16   (W_ih gate blocks, no transpose needed)
      b: (3H, 1)   f32     (b_ih + b_hh per gate)
    """
    kparams = []
    for layer in raw_params:
        W_ih = layer["w_ih"]                      # (4H, d_in), gate order (i, f, g, o)
        b_sum = layer["b_ih"] + layer["b_hh"]     # (4H,)
        H = layer["w_hh"].shape[1]
        gate_rows = (0, 2, 3)                     # keep i, g, o; forget gate pruned
        w = jnp.concatenate([W_ih[r * H:(r + 1) * H, :] for r in gate_rows], axis=0)
        b = jnp.concatenate([b_sum[r * H:(r + 1) * H] for r in gate_rows], axis=0)
        kparams.append({"w": w.astype(jnp.bfloat16),
                        "b": b.reshape(3 * H, 1).astype(jnp.float32)})
    return kparams


# ---------------------------------------------------------------------------
# Pure-JAX reference: full, unfolded PyTorch LSTMCell math on the RAW params.
# Catches gate-order / folding / layout mistakes in the conversion above.
# ---------------------------------------------------------------------------
def _reference_forward(x, raw_params):
    h = x
    for layer in raw_params:
        W_ih, W_hh = layer["w_ih"], layer["w_hh"]
        b_ih, b_hh = layer["b_ih"], layer["b_hh"]
        H = W_hh.shape[1]
        h_prev = jnp.zeros((x.shape[0], H), jnp.float32)
        c_prev = jnp.zeros((x.shape[0], H), jnp.float32)
        gates = h @ W_ih.T + b_ih + h_prev @ W_hh.T + b_hh
        i = jax.nn.sigmoid(gates[:, 0 * H:1 * H])
        f = jax.nn.sigmoid(gates[:, 1 * H:2 * H])
        g = jnp.tanh(gates[:, 2 * H:3 * H])
        o = jax.nn.sigmoid(gates[:, 3 * H:4 * H])
        c = f * c_prev + i * g
        h = o * jnp.tanh(c)
    return h


# ---------------------------------------------------------------------------
if __name__ == "__main__":
    # Shapes consistent with the module: input_dim=16, num_units=[32,32,32].
    B, INPUT_DIM = 256, 16
    NUM_UNITS = [32, 32, 32]

    key = jax.random.PRNGKey(0)
    key, xk = jax.random.split(key)
    x = jax.random.normal(xk, (B, INPUT_DIM), jnp.float32)

    raw_params = init_raw_params(key, INPUT_DIM, NUM_UNITS)
    kparams = convert_params_for_kernel(raw_params)

    out = jax.block_until_ready(rnn_forward(x, kparams))
    ref = _reference_forward(x, raw_params)

    assert out.shape == (B, NUM_UNITS[-1])
    # bf16 MXU inputs -> relax tolerance vs. the pure-f32 reference.
    assert jnp.allclose(out, ref, atol=2e-2, rtol=2e-2), \
        float(jnp.max(jnp.abs(out - ref)))

    print("KERNEL_OK")
</pallas_src>

<mosaic_0001>
module attributes {stable_mosaic.version = 11 : i64} {
  func.func @rnn_kernel(%arg0: i32, %arg1: memref<256x16xf32, #tpu.memory_space<vmem>>, %arg2: memref<96x16xbf16, #tpu.memory_space<vmem>>, %arg3: memref<96x1xf32, #tpu.memory_space<vmem>>, %arg4: memref<96x32xbf16, #tpu.memory_space<vmem>>, %arg5: memref<96x1xf32, #tpu.memory_space<vmem>>, %arg6: memref<96x32xbf16, #tpu.memory_space<vmem>>, %arg7: memref<96x1xf32, #tpu.memory_space<vmem>>, %arg8: memref<256x32xf32, #tpu.memory_space<vmem>>) attributes {dimension_semantics = [#tpu.dimension_semantics<parallel>], iteration_bounds = array<i64: 1>, scalar_prefetch = 0 : i64, scratch_operands = 0 : i64, tpu.core_type = #tpu.core_type<tc>, window_params = [{transform_indices = @transform_0, window_bounds = array<i64: 256, 16>}, {pipeline_mode = #tpu.pipeline_mode<synchronous>, transform_indices = @transform_1, window_bounds = array<i64: 96, 16>}, {pipeline_mode = #tpu.pipeline_mode<synchronous>, transform_indices = @transform_2, window_bounds = array<i64: 96, 1>}, {pipeline_mode = #tpu.pipeline_mode<synchronous>, transform_indices = @transform_3, window_bounds = array<i64: 96, 32>}, {pipeline_mode = #tpu.pipeline_mode<synchronous>, transform_indices = @transform_4, window_bounds = array<i64: 96, 1>}, {pipeline_mode = #tpu.pipeline_mode<synchronous>, transform_indices = @transform_5, window_bounds = array<i64: 96, 32>}, {pipeline_mode = #tpu.pipeline_mode<synchronous>, transform_indices = @transform_6, window_bounds = array<i64: 96, 1>}, {transform_indices = @transform_7, window_bounds = array<i64: 256, 32>}]} {
    %c0 = arith.constant 0 : index
    %c0_0 = arith.constant 0 : index
    %0 = vector.load %arg1[%c0, %c0_0] : memref<256x16xf32, #tpu.memory_space<vmem>>, vector<256x16xf32>
    %1 = arith.truncf %0 : vector<256x16xf32> to vector<256x16xbf16>
    %c0_1 = arith.constant 0 : index
    %c0_2 = arith.constant 0 : index
    %2 = vector.load %arg2[%c0_1, %c0_2] : memref<96x16xbf16, #tpu.memory_space<vmem>>, vector<96x16xbf16>
    %cst = arith.constant dense<0.000000e+00> : vector<96x256xf32>
    %3 = tpu.matmul %2, %1, %cst {dimension_numbers = #tpu.dot_dimension_numbers<[1], [1], [0], [0], [0, 0, 1, 0], [], []>} : vector<96x16xbf16>, vector<256x16xbf16>, vector<96x256xf32> -> vector<96x256xf32>
    %c0_3 = arith.constant 0 : index
    %c0_4 = arith.constant 0 : index
    %4 = vector.load %arg3[%c0_3, %c0_4] : memref<96x1xf32, #tpu.memory_space<vmem>>, vector<96x1xf32>
    %5 = vector.broadcast %4 : vector<96x1xf32> to vector<96x256xf32>
    %6 = arith.addf %3, %5 : vector<96x256xf32>
    %7 = vector.extract_strided_slice %6 {offsets = [0, 0], sizes = [32, 256], strides = [1, 1]} : vector<96x256xf32> to vector<32x256xf32>
    %8 = arith.negf %7 : vector<32x256xf32>
    %9 = math.exp %8 : vector<32x256xf32>
    %cst_5 = arith.constant 1.000000e+00 : f32
    %10 = vector.broadcast %cst_5 : f32 to vector<32x256xf32>
    %11 = arith.addf %10, %9 : vector<32x256xf32>
    %12 = arith.divf %10, %11 : vector<32x256xf32>
    %13 = vector.extract_strided_slice %6 {offsets = [32, 0], sizes = [32, 256], strides = [1, 1]} : vector<96x256xf32> to vector<32x256xf32>
    %14 = math.tanh %13 : vector<32x256xf32>
    %15 = vector.extract_strided_slice %6 {offsets = [64, 0], sizes = [32, 256], strides = [1, 1]} : vector<96x256xf32> to vector<32x256xf32>
    %16 = arith.negf %15 : vector<32x256xf32>
    %17 = math.exp %16 : vector<32x256xf32>
    %cst_6 = arith.constant 1.000000e+00 : f32
    %18 = vector.broadcast %cst_6 : f32 to vector<32x256xf32>
    %19 = arith.addf %18, %17 : vector<32x256xf32>
    %20 = arith.divf %18, %19 : vector<32x256xf32>
    %21 = arith.mulf %12, %14 : vector<32x256xf32>
    %22 = math.tanh %21 : vector<32x256xf32>
    %23 = arith.mulf %20, %22 : vector<32x256xf32>
    %c0_7 = arith.constant 0 : index
    %c0_8 = arith.constant 0 : index
    %24 = vector.load %arg4[%c0_7, %c0_8] : memref<96x32xbf16, #tpu.memory_space<vmem>>, vector<96x32xbf16>
    %25 = arith.truncf %23 : vector<32x256xf32> to vector<32x256xbf16>
    %cst_9 = arith.constant dense<0.000000e+00> : vector<96x256xf32>
    %26 = tpu.matmul %24, %25, %cst_9 {dimension_numbers = #tpu.dot_dimension_numbers<[1], [0], [0], [1], [0, 0, 1, 1], [], []>} : vector<96x32xbf16>, vector<32x256xbf16>, vector<96x256xf32> -> vector<96x256xf32>
    %c0_10 = arith.constant 0 : index
    %c0_11 = arith.constant 0 : index
    %27 = vector.load %arg5[%c0_10, %c0_11] : memref<96x1xf32, #tpu.memory_space<vmem>>, vector<96x1xf32>
    %28 = vector.broadcast %27 : vector<96x1xf32> to vector<96x256xf32>
    %29 = arith.addf %26, %28 : vector<96x256xf32>
    %30 = vector.extract_strided_slice %29 {offsets = [0, 0], sizes = [32, 256], strides = [1, 1]} : vector<96x256xf32> to vector<32x256xf32>
    %31 = arith.negf %30 : vector<32x256xf32>
    %32 = math.exp %31 : vector<32x256xf32>
    %cst_12 = arith.constant 1.000000e+00 : f32
    %33 = vector.broadcast %cst_12 : f32 to vector<32x256xf32>
    %34 = arith.addf %33, %32 : vector<32x256xf32>
    %35 = arith.divf %33, %34 : vector<32x256xf32>
    %36 = vector.extract_strided_slice %29 {offsets = [32, 0], sizes = [32, 256], strides = [1, 1]} : vector<96x256xf32> to vector<32x256xf32>
    %37 = math.tanh %36 : vector<32x256xf32>
    %38 = vector.extract_strided_slice %29 {offsets = [64, 0], sizes = [32, 256], strides = [1, 1]} : vector<96x256xf32> to vector<32x256xf32>
    %39 = arith.negf %38 : vector<32x256xf32>
    %40 = math.exp %39 : vector<32x256xf32>
    %cst_13 = arith.constant 1.000000e+00 : f32
    %41 = vector.broadcast %cst_13 : f32 to vector<32x256xf32>
    %42 = arith.addf %41, %40 : vector<32x256xf32>
    %43 = arith.divf %41, %42 : vector<32x256xf32>
    %44 = arith.mulf %35, %37 : vector<32x256xf32>
    %45 = math.tanh %44 : vector<32x256xf32>
    %46 = arith.mulf %43, %45 : vector<32x256xf32>
    %c0_14 = arith.constant 0 : index
    %c0_15 = arith.constant 0 : index
    %47 = vector.load %arg6[%c0_14, %c0_15] : memref<96x32xbf16, #tpu.memory_space<vmem>>, vector<96x32xbf16>
    %48 = arith.truncf %46 : vector<32x256xf32> to vector<32x256xbf16>
    %cst_16 = arith.constant dense<0.000000e+00> : vector<96x256xf32>
    %49 = tpu.matmul %47, %48, %cst_16 {dimension_numbers = #tpu.dot_dimension_numbers<[1], [0], [0], [1], [0, 0, 1, 1], [], []>} : vector<96x32xbf16>, vector<32x256xbf16>, vector<96x256xf32> -> vector<96x256xf32>
    %c0_17 = arith.constant 0 : index
    %c0_18 = arith.constant 0 : index
    %50 = vector.load %arg7[%c0_17, %c0_18] : memref<96x1xf32, #tpu.memory_space<vmem>>, vector<96x1xf32>
    %51 = vector.broadcast %50 : vector<96x1xf32> to vector<96x256xf32>
    %52 = arith.addf %49, %51 : vector<96x256xf32>
    %53 = vector.extract_strided_slice %52 {offsets = [0, 0], sizes = [32, 256], strides = [1, 1]} : vector<96x256xf32> to vector<32x256xf32>
    %54 = arith.negf %53 : vector<32x256xf32>
    %55 = math.exp %54 : vector<32x256xf32>
    %cst_19 = arith.constant 1.000000e+00 : f32
    %56 = vector.broadcast %cst_19 : f32 to vector<32x256xf32>
    %57 = arith.addf %56, %55 : vector<32x256xf32>
    %58 = arith.divf %56, %57 : vector<32x256xf32>
    %59 = vector.extract_strided_slice %52 {offsets = [32, 0], sizes = [32, 256], strides = [1, 1]} : vector<96x256xf32> to vector<32x256xf32>
    %60 = math.tanh %59 : vector<32x256xf32>
    %61 = vector.extract_strided_slice %52 {offsets = [64, 0], sizes = [32, 256], strides = [1, 1]} : vector<96x256xf32> to vector<32x256xf32>
    %62 = arith.negf %61 : vector<32x256xf32>
    %63 = math.exp %62 : vector<32x256xf32>
    %cst_20 = arith.constant 1.000000e+00 : f32
    %64 = vector.broadcast %cst_20 : f32 to vector<32x256xf32>
    %65 = arith.addf %64, %63 : vector<32x256xf32>
    %66 = arith.divf %64, %65 : vector<32x256xf32>
    %67 = arith.mulf %58, %60 : vector<32x256xf32>
    %68 = math.tanh %67 : vector<32x256xf32>
    %69 = arith.mulf %66, %68 : vector<32x256xf32>
    %70 = tpu.transpose %69, [1, 0] : vector<32x256xf32> -> vector<256x32xf32>
    %c0_21 = arith.constant 0 : index
    %c0_22 = arith.constant 0 : index
    %71 = vector.load %arg8[%c0_21, %c0_22] : memref<256x32xf32, #tpu.memory_space<vmem>>, vector<256x32xf32>
    tpu.vector_store %arg8[%c0_21, %c0_22], %70 {strides = array<i32>} : memref<256x32xf32, #tpu.memory_space<vmem>>, vector<256x32xf32>,
    return
  }
  func.func @transform_0(%arg0: i32) -> (i32, i32) {
    %c0_i32 = arith.constant 0 : i32
    %c0_i32_0 = arith.constant 0 : i32
    return %arg0, %c0_i32 : i32, i32
  }
  func.func @transform_1(%arg0: i32) -> (i32, i32) {
    %c0_i32 = arith.constant 0 : i32
    %c0_i32_0 = arith.constant 0 : i32
    %c0_i32_1 = arith.constant 0 : i32
    return %c0_i32, %c0_i32_0 : i32, i32
  }
  func.func @transform_2(%arg0: i32) -> (i32, i32) {
    %c0_i32 = arith.constant 0 : i32
    %c0_i32_0 = arith.constant 0 : i32
    %c0_i32_1 = arith.constant 0 : i32
    return %c0_i32, %c0_i32_0 : i32, i32
  }
  func.func @transform_3(%arg0: i32) -> (i32, i32) {
    %c0_i32 = arith.constant 0 : i32
    %c0_i32_0 = arith.constant 0 : i32
    %c0_i32_1 = arith.constant 0 : i32
    return %c0_i32, %c0_i32_0 : i32, i32
  }
  func.func @transform_4(%arg0: i32) -> (i32, i32) {
    %c0_i32 = arith.constant 0 : i32
    %c0_i32_0 = arith.constant 0 : i32
    %c0_i32_1 = arith.constant 0 : i32
    return %c0_i32, %c0_i32_0 : i32, i32
  }
  func.func @transform_5(%arg0: i32) -> (i32, i32) {
    %c0_i32 = arith.constant 0 : i32
    %c0_i32_0 = arith.constant 0 : i32
    %c0_i32_1 = arith.constant 0 : i32
    return %c0_i32, %c0_i32_0 : i32, i32
  }
  func.func @transform_6(%arg0: i32) -> (i32, i32) {
    %c0_i32 = arith.constant 0 : i32
    %c0_i32_0 = arith.constant 0 : i32
    %c0_i32_1 = arith.constant 0 : i32
    return %c0_i32, %c0_i32_0 : i32, i32
  }
  func.func @transform_7(%arg0: i32) -> (i32, i32) {
    %c0_i32 = arith.constant 0 : i32
    %c0_i32_0 = arith.constant 0 : i32
    return %arg0, %c0_i32 : i32, i32
  }
}

</mosaic_0001>

<llo_original>
// kernel: tpu_custom_call.1
$region0: #{tpu_custom_call.1}
  #allocation0 [shape = 'u32[]', space=smem, size = 0x4, offset = 0x4, fixed_abs, tag = 'smem constant byte address 0x4 - core index']
  #allocation1 [shape = 'u32[144,128]{1,0:T(1,128)}', space=vmem, size = 0x12000, scoped, tag = 'internal scratch']
  %s0 = inlined_call_operand.vmem [shape: f32[256,16], index: 0, kind: input, shape index: {}]
  %s1 = inlined_call_operand.vmem [shape: bf16[96,16], index: 1, kind: input, shape index: {}]
  %s2 = inlined_call_operand.vmem [shape: f32[96,1], index: 2, kind: input, shape index: {}]
  %s3 = inlined_call_operand.vmem [shape: bf16[96,32], index: 3, kind: input, shape index: {}]
  %s4 = inlined_call_operand.vmem [shape: f32[96,1], index: 4, kind: input, shape index: {}]
  %s5 = inlined_call_operand.vmem [shape: bf16[96,32], index: 5, kind: input, shape index: {}]
  %s6 = inlined_call_operand.vmem [shape: f32[96,1], index: 6, kind: input, shape index: {}]
  %s7 = inlined_call_operand.vmem [shape: f32[256,32], index: 7, kind: output, shape index: {}]
  %s8 = sld [smem:[#allocation0]]
  $region38: #{tpu_custom_call.1} parent=0
    _
  %s10 = ssub.s32 1, %s8
  %s11 = scalar_select 0, %s10, %s8
  // Predicated region
  $region2: #{tpu_custom_call.1} parent=0 // pred_check
    _
  $region3: #{tpu_custom_call.1} parent=0 // pred_check_branch
    %13 = sbr.rel (0) target = $region5
  $region4: #{tpu_custom_call.1} parent=0 // pred_region
    _
  $region5: #{tpu_custom_call.1} parent=0 // pred_fallthru
    _
  // Predicated region
  $region6: #{tpu_custom_call.1} parent=0 // pred_check
    _
  $region7: #{tpu_custom_call.1} parent=0 // pred_check_branch
    %15 = sbr.rel (0) target = $region9
  $region8: #{tpu_custom_call.1} parent=0 // pred_region
    _
  $region9: #{tpu_custom_call.1} parent=0 // pred_fallthru
    _
  // Predicated region
  $region10: #{tpu_custom_call.1} parent=0 // pred_check
    _
  $region11: #{tpu_custom_call.1} parent=0 // pred_check_branch
    %17 = sbr.rel (0) target = $region13
  $region12: #{tpu_custom_call.1} parent=0 // pred_region
    _
  $region13: #{tpu_custom_call.1} parent=0 // pred_fallthru
    _
  // Predicated region
  $region14: #{tpu_custom_call.1} parent=0 // pred_check
    _
  $region15: #{tpu_custom_call.1} parent=0 // pred_check_branch
    %19 = sbr.rel (0) target = $region17
  $region16: #{tpu_custom_call.1} parent=0 // pred_region
    _
  $region17: #{tpu_custom_call.1} parent=0 // pred_fallthru
    _
  // Predicated region
  $region18: #{tpu_custom_call.1} parent=0 // pred_check
    _
  $region19: #{tpu_custom_call.1} parent=0 // pred_check_branch
    %21 = sbr.rel (0) target = $region21
  $region20: #{tpu_custom_call.1} parent=0 // pred_region
    _
  $region21: #{tpu_custom_call.1} parent=0 // pred_fallthru
    _
  // Predicated region
  $region22: #{tpu_custom_call.1} parent=0 // pred_check
    _
  $region23: #{tpu_custom_call.1} parent=0 // pred_check_branch
    %23 = sbr.rel (0) target = $region25
  $region24: #{tpu_custom_call.1} parent=0 // pred_region
    _
  $region25: #{tpu_custom_call.1} parent=0 // pred_fallthru
    _
  // Predicated region
  $region26: #{tpu_custom_call.1} parent=0 // pred_check
    _
  $region27: #{tpu_custom_call.1} parent=0 // pred_check_branch
    %25 = sbr.rel (0) target = $region29
  $region28: #{tpu_custom_call.1} parent=0 // pred_region
    _
  $region29: #{tpu_custom_call.1} parent=0 // pred_fallthru
    _
  %v27 = vld [vmem:[%s0] sm:$0xff]
  %v28 = vld [vmem:[%s0 + $0x8] sm:$0xff]
  %v29 = vld [vmem:[%s0 + $0x10] sm:$0xff]
  %v30 = vld [vmem:[%s0 + $0x18] sm:$0xff]
  %v31 = vld [vmem:[%s0 + $0x20] sm:$0xff]
  %v32 = vld [vmem:[%s0 + $0x28] sm:$0xff]
  %v33 = vld [vmem:[%s0 + $0x30] sm:$0xff]
  %v34 = vld [vmem:[%s0 + $0x38] sm:$0xff]
  %v35 = vld [vmem:[%s0 + $0x40] sm:$0xff]
  %v36 = vld [vmem:[%s0 + $0x48] sm:$0xff]
  %v37 = vld [vmem:[%s0 + $0x50] sm:$0xff]
  %v38 = vld [vmem:[%s0 + $0x58] sm:$0xff]
  %v39 = vld [vmem:[%s0 + $0x60] sm:$0xff]
  %v40 = vld [vmem:[%s0 + $0x68] sm:$0xff]
  %v41 = vld [vmem:[%s0 + $0x70] sm:$0xff]
  %v42 = vld [vmem:[%s0 + $0x78] sm:$0xff]
  %v43 = vld [vmem:[%s0 + $0x80] sm:$0xff]
  %v44 = vld [vmem:[%s0 + $0x88] sm:$0xff]
  %v45 = vld [vmem:[%s0 + $0x90] sm:$0xff]
  %v46 = vld [vmem:[%s0 + $0x98] sm:$0xff]
  %v47 = vld [vmem:[%s0 + $0xa0] sm:$0xff]
  %v48 = vld [vmem:[%s0 + $0xa8] sm:$0xff]
  %v49 = vld [vmem:[%s0 + $0xb0] sm:$0xff]
  %v50 = vld [vmem:[%s0 + $0xb8] sm:$0xff]
  %v51 = vld [vmem:[%s0 + $0xc0] sm:$0xff]
  %v52 = vld [vmem:[%s0 + $0xc8] sm:$0xff]
  %v53 = vld [vmem:[%s0 + $0xd0] sm:$0xff]
  %v54 = vld [vmem:[%s0 + $0xd8] sm:$0xff]
  %v55 = vld [vmem:[%s0 + $0xe0] sm:$0xff]
  %v56 = vld [vmem:[%s0 + $0xe8] sm:$0xff]
  %v57 = vld [vmem:[%s0 + $0xf0] sm:$0xff]
  %v58 = vld [vmem:[%s0 + $0xf8] sm:$0xff]
  %v59 = vpack.c.bf16 %v28, %v27
  %v60 = vpack.c.bf16 %v30, %v29
  %v61 = vpack.c.bf16 %v32, %v31
  %v62 = vpack.c.bf16 %v34, %v33
  %v63 = vpack.c.bf16 %v36, %v35
  %v64 = vpack.c.bf16 %v38, %v37
  %v65 = vpack.c.bf16 %v40, %v39
  %v66 = vpack.c.bf16 %v42, %v41
  %v67 = vpack.c.bf16 %v44, %v43
  %v68 = vpack.c.bf16 %v46, %v45
  %v69 = vpack.c.bf16 %v48, %v47
  %v70 = vpack.c.bf16 %v50, %v49
  %v71 = vpack.c.bf16 %v52, %v51
  %v72 = vpack.c.bf16 %v54, %v53
  %v73 = vpack.c.bf16 %v56, %v55
  %v74 = vpack.c.bf16 %v58, %v57
  %v75 = vld [vmem:[%s1] sm:$0xf]
  %v76 = vld [vmem:[%s1 + $0x4] sm:$0xf]
  %v77 = vld [vmem:[%s1 + $0x8] sm:$0xf]
  %v78 = vld [vmem:[%s1 + $0xc] sm:$0xf]
  %v79 = vld [vmem:[%s1 + $0x10] sm:$0xf]
  %v80 = vld [vmem:[%s1 + $0x14] sm:$0xf]
  %v81 = vld [vmem:[%s1 + $0x18] sm:$0xf]
  %v82 = vld [vmem:[%s1 + $0x1c] sm:$0xf]
  %v83 = vld [vmem:[%s1 + $0x20] sm:$0xf]
  %v84 = vld [vmem:[%s1 + $0x24] sm:$0xf]
  %v85 = vld [vmem:[%s1 + $0x28] sm:$0xf]
  %v86 = vld [vmem:[%s1 + $0x2c] sm:$0xf]
  %v87 = vld [vmem:[%s2] sm:$0xff]
  %v88 = vld [vmem:[%s2 + $0x8] sm:$0xff]
  %v89 = vld [vmem:[%s2 + $0x10] sm:$0xff]
  %v90 = vld [vmem:[%s2 + $0x18] sm:$0xff]
  %v91 = vld [vmem:[%s2 + $0x20] sm:$0xff]
  %v92 = vld [vmem:[%s2 + $0x28] sm:$0xff]
  %v93 = vld [vmem:[%s2 + $0x30] sm:$0xff]
  %v94 = vld [vmem:[%s2 + $0x38] sm:$0xff]
  %v95 = vld [vmem:[%s2 + $0x40] sm:$0xff]
  %v96 = vld [vmem:[%s2 + $0x48] sm:$0xff]
  %v97 = vld [vmem:[%s2 + $0x50] sm:$0xff]
  %v98 = vld [vmem:[%s2 + $0x58] sm:$0xff]
  %100 = vset.pattern.permute.xlu0 0
  %101 = vperm.xlu0 %100, %v87
  %v102 = vpop.permute.xlu0 %101
  %105 = vset.pattern.permute.xlu0 0
  %106 = vperm.xlu0 %105, %v88
  %v107 = vpop.permute.xlu0 %106
  %110 = vset.pattern.permute.xlu0 0
  %111 = vperm.xlu0 %110, %v89
  %v112 = vpop.permute.xlu0 %111
  %115 = vset.pattern.permute.xlu0 0
  %116 = vperm.xlu0 %115, %v90
  %v117 = vpop.permute.xlu0 %116
  %120 = vset.pattern.permute.xlu0 0
  %121 = vperm.xlu0 %120, %v91
  %v122 = vpop.permute.xlu0 %121
  %125 = vset.pattern.permute.xlu0 0
  %126 = vperm.xlu0 %125, %v92
  %v127 = vpop.permute.xlu0 %126
  %130 = vset.pattern.permute.xlu0 0
  %131 = vperm.xlu0 %130, %v93
  %v132 = vpop.permute.xlu0 %131
  %135 = vset.pattern.permute.xlu0 0
  %136 = vperm.xlu0 %135, %v94
  %v137 = vpop.permute.xlu0 %136
  %140 = vset.pattern.permute.xlu0 0
  %141 = vperm.xlu0 %140, %v95
  %v142 = vpop.permute.xlu0 %141
  %145 = vset.pattern.permute.xlu0 0
  %146 = vperm.xlu0 %145, %v96
  %v147 = vpop.permute.xlu0 %146
  %150 = vset.pattern.permute.xlu0 0
  %151 = vperm.xlu0 %150, %v97
  %v152 = vpop.permute.xlu0 %151
  %155 = vset.pattern.permute.xlu0 0
  %156 = vperm.xlu0 %155, %v98
  %v157 = vpop.permute.xlu0 %156
  %v171 = vunpack.c.l.b16 %v75
  %v172 = vunpack.c.l.b16 %v76
  %v173 = vunpack.c.l.b16 %v77
  %v174 = vunpack.c.l.b16 %v78
  %v175 = vunpack.c.l.b16 %v79
  %v176 = vunpack.c.l.b16 %v80
  %v177 = vunpack.c.l.b16 %v81
  %v178 = vunpack.c.l.b16 %v82
  %v179 = vunpack.c.l.b16 %v83
  %v180 = vunpack.c.l.b16 %v84
  %v181 = vunpack.c.l.b16 %v85
  %v182 = vunpack.c.l.b16 %v86
  %v183 = vpack.c.b16 %v172, %v171
  %v184 = vpack.c.b16 %v174, %v173
  %v185 = vpack.c.b16 %v176, %v175
  %v186 = vpack.c.b16 %v178, %v177
  %v187 = vpack.c.b16 %v180, %v179
  %v188 = vpack.c.b16 %v182, %v181
  %vm189 = vcmask 130048
  %v191 = vsel %vm189, %v183, 0
  %v194 = vsel %vm189, %v184, 0
  %v197 = vsel %vm189, %v185, 0
  %v200 = vsel %vm189, %v186, 0
  %v203 = vsel %vm189, %v187, 0
  %v206 = vsel %vm189, %v188, 0
  %v209 = vsel %vm189, %v59, 0
  %v212 = vsel %vm189, %v60, 0
  %v215 = vsel %vm189, %v61, 0
  %v218 = vsel %vm189, %v62, 0
  %v221 = vsel %vm189, %v63, 0
  %v224 = vsel %vm189, %v64, 0
  %v227 = vsel %vm189, %v65, 0
  %v230 = vsel %vm189, %v66, 0
  %v233 = vsel %vm189, %v67, 0
  %v236 = vsel %vm189, %v68, 0
  %v239 = vsel %vm189, %v69, 0
  %v242 = vsel %vm189, %v70, 0
  %v245 = vsel %vm189, %v71, 0
  %v248 = vsel %vm189, %v72, 0
  %v251 = vsel %vm189, %v73, 0
  %v254 = vsel %vm189, %v74, 0
  %256 = vmatprep.subr.bf16.mxu0 0
  %257 = vmatpush1.bf16.xpose.msra.mxu0 %v230
  %258 = vmatprep.subr.bf16.mxu0 0
  %259 = vmatpush1.bf16.xpose.msra.mxu0 %v227
  %260 = vmatprep.subr.bf16.mxu0 0
  %261 = vmatpush1.bf16.xpose.msra.mxu0 %v224
  %262 = vmatprep.subr.bf16.mxu0 0
  %263 = vmatpush1.bf16.xpose.msra.mxu0 %v221
  %264 = vmatprep.subr.bf16.mxu0 0
  %265 = vmatpush1.bf16.xpose.msra.mxu0 %v218
  %266 = vmatprep.subr.bf16.mxu0 0
  %267 = vmatpush1.bf16.xpose.msra.mxu0 %v215
  %268 = vmatprep.subr.bf16.mxu0 0
  %269 = vmatpush1.bf16.xpose.msra.mxu0 %v212
  %270 = vmatprep.subr.bf16.mxu0 0
  %271 = vmatpush1.bf16.xpose.msra.mxu0 %v209
  %272 = vmatprep.subr.bf16.mxu0 0
  %273 = vmatpush2.bf16.xpose.msra.mxu0 %v254
  %274 = vmatprep.subr.bf16.mxu0 0
  %275 = vmatpush2.bf16.xpose.msra.mxu0 %v251
  %276 = vmatprep.subr.bf16.mxu0 0
  %277 = vmatpush2.bf16.xpose.msra.mxu0 %v248
  %278 = vmatprep.subr.bf16.mxu0 0
  %279 = vmatpush2.bf16.xpose.msra.mxu0 %v245
  %280 = vmatprep.subr.bf16.mxu0 0
  %281 = vmatpush2.bf16.xpose.msra.mxu0 %v242
  %282 = vmatprep.subr.bf16.mxu0 0
  %283 = vmatpush2.bf16.xpose.msra.mxu0 %v239
  %284 = vmatprep.subr.bf16.mxu0 0
  %285 = vmatpush2.bf16.xpose.msra.mxu0 %v236
  %286 = vmatprep.subr.bf16.mxu0 0
  %287 = vmatpush2.bf16.xpose.msra.mxu0 %v233
  %288 = vmatprep.mubr.bf16.mxu0 0
  %289 = vmatmul.mubr.bf16.gmra.mxu0 %v191
  %v290 = vpop.f32.mrf.mxu0
  %v291 = vadd.f32 %v102, %v290
  %v292 = vpop.f32.mrf.mxu0
  %v293 = vadd.f32 %v102, %v292
  %v294 = vpop.f32.mrf.mxu0
  %v295 = vadd.f32 %v107, %v294
  %v296 = vpop.f32.mrf.mxu0
  %v297 = vadd.f32 %v107, %v296
  %298 = vmatprep.mubr.bf16.mxu0 0
  %299 = vmatmul.mubr.bf16.gmra.mxu0 %v194
  %v300 = vpop.f32.mrf.mxu0
  %v301 = vadd.f32 %v112, %v300
  %v302 = vpop.f32.mrf.mxu0
  %v303 = vadd.f32 %v112, %v302
  %v304 = vpop.f32.mrf.mxu0
  %v305 = vadd.f32 %v117, %v304
  %v306 = vpop.f32.mrf.mxu0
  %v307 = vadd.f32 %v117, %v306
  %308 = vmatprep.mubr.bf16.mxu0 0
  %309 = vmatmul.mubr.bf16.gmra.mxu0 %v197
  %v310 = vpop.f32.mrf.mxu0
  %v311 = vadd.f32 %v122, %v310
  %v312 = vpop.f32.mrf.mxu0
  %v313 = vadd.f32 %v122, %v312
  %v314 = vpop.f32.mrf.mxu0
  %v315 = vadd.f32 %v127, %v314
  %v316 = vpop.f32.mrf.mxu0
  %v317 = vadd.f32 %v127, %v316
  %318 = vmatprep.mubr.bf16.mxu0 0
  %319 = vmatmul.mubr.bf16.gmra.mxu0 %v200
  %v320 = vpop.f32.mrf.mxu0
  %v321 = vadd.f32 %v132, %v320
  %v322 = vpop.f32.mrf.mxu0
  %v323 = vadd.f32 %v132, %v322
  %v324 = vpop.f32.mrf.mxu0
  %v325 = vadd.f32 %v137, %v324
  %v326 = vpop.f32.mrf.mxu0
  %v327 = vadd.f32 %v137, %v326
  %328 = vmatprep.mubr.bf16.mxu0 0
  %329 = vmatmul.mubr.bf16.gmra.mxu0 %v203
  %v330 = vpop.f32.mrf.mxu0
  %v331 = vadd.f32 %v142, %v330
  %v332 = vpop.f32.mrf.mxu0
  %v333 = vadd.f32 %v142, %v332
  %v334 = vpop.f32.mrf.mxu0
  %v335 = vadd.f32 %v147, %v334
  %v336 = vpop.f32.mrf.mxu0
  %v337 = vadd.f32 %v147, %v336
  %338 = vmatprep.mubr.bf16.mxu0 0
  %339 = vmatmul.mubr.bf16.gmra.mxu0 %v206
  %v340 = vpop.f32.mrf.mxu0
  %v341 = vadd.f32 %v152, %v340
  %v342 = vpop.f32.mrf.mxu0
  %v343 = vadd.f32 %v152, %v342
  %v344 = vpop.f32.mrf.mxu0
  %v345 = vadd.f32 %v157, %v344
  %v346 = vpop.f32.mrf.mxu0
  %v347 = vadd.f32 %v157, %v346
  %348 = vdwg.mxu0
  %v349 = vxor.u32 %v291, 2147483648
  %v350 = vxor.u32 %v293, 2147483648
  %v351 = vxor.u32 %v295, 2147483648
  %v352 = vxor.u32 %v297, 2147483648
  %v353 = vxor.u32 %v301, 2147483648
  %v354 = vxor.u32 %v303, 2147483648
  %v355 = vxor.u32 %v305, 2147483648
  %v356 = vxor.u32 %v307, 2147483648
  %v357 = vmul.f32 %v349, 1.442695
  %v358 = vpow.pop %v357
  %v359 = vmul.f32 %v350, 1.442695
  %v360 = vpow.pop %v359
  %v361 = vmul.f32 %v351, 1.442695
  %v362 = vpow.pop %v361
  %v363 = vmul.f32 %v352, 1.442695
  %v364 = vpow.pop %v363
  %v365 = vmul.f32 %v353, 1.442695
  %v366 = vpow.pop %v365
  %v367 = vmul.f32 %v354, 1.442695
  %v368 = vpow.pop %v367
  %v369 = vmul.f32 %v355, 1.442695
  %v370 = vpow.pop %v369
  %v371 = vmul.f32 %v356, 1.442695
  %v372 = vpow.pop %v371
  %v373 = vadd.f32 %v358, 1.0
  %v374 = vadd.f32 %v360, 1.0
  %v375 = vadd.f32 %v362, 1.0
  %v376 = vadd.f32 %v364, 1.0
  %v377 = vadd.f32 %v366, 1.0
  %v378 = vadd.f32 %v368, 1.0
  %v379 = vadd.f32 %v370, 1.0
  %v380 = vadd.f32 %v372, 1.0
  %v381 = vrcp.pop %v373
  %v382 = vmul.f32 1.0, %v381
  %v383 = vrcp.pop %v374
  %v384 = vmul.f32 1.0, %v383
  %v385 = vrcp.pop %v375
  %v386 = vmul.f32 1.0, %v385
  %v387 = vrcp.pop %v376
  %v388 = vmul.f32 1.0, %v387
  %v389 = vrcp.pop %v377
  %v390 = vmul.f32 1.0, %v389
  %v391 = vrcp.pop %v378
  %v392 = vmul.f32 1.0, %v391
  %v393 = vrcp.pop %v379
  %v394 = vmul.f32 1.0, %v393
  %v395 = vrcp.pop %v380
  %v396 = vmul.f32 1.0, %v395
  %v397 = vtanh.pop %v311
  %v398 = vtanh.pop %v313
  %v399 = vtanh.pop %v315
  %v400 = vtanh.pop %v317
  %v401 = vtanh.pop %v321
  %v402 = vtanh.pop %v323
  %v403 = vtanh.pop %v325
  %v404 = vtanh.pop %v327
  %v405 = vxor.u32 %v331, 2147483648
  %v406 = vxor.u32 %v333, 2147483648
  %v407 = vxor.u32 %v335, 2147483648
  %v408 = vxor.u32 %v337, 2147483648
  %v409 = vxor.u32 %v341, 2147483648
  %v410 = vxor.u32 %v343, 2147483648
  %v411 = vxor.u32 %v345, 2147483648
  %v412 = vxor.u32 %v347, 2147483648
  %v413 = vmul.f32 %v405, 1.442695
  %v414 = vpow.pop %v413
  %v415 = vmul.f32 %v406, 1.442695
  %v416 = vpow.pop %v415
  %v417 = vmul.f32 %v407, 1.442695
  %v418 = vpow.pop %v417
  %v419 = vmul.f32 %v408, 1.442695
  %v420 = vpow.pop %v419
  %v421 = vmul.f32 %v409, 1.442695
  %v422 = vpow.pop %v421
  %v423 = vmul.f32 %v410, 1.442695
  %v424 = vpow.pop %v423
  %v425 = vmul.f32 %v411, 1.442695
  %v426 = vpow.pop %v425
  %v427 = vmul.f32 %v412, 1.442695
  %v428 = vpow.pop %v427
  %v429 = vadd.f32 %v414, 1.0
  %v430 = vadd.f32 %v416, 1.0
  %v431 = vadd.f32 %v418, 1.0
  %v432 = vadd.f32 %v420, 1.0
  %v433 = vadd.f32 %v422, 1.0
  %v434 = vadd.f32 %v424, 1.0
  %v435 = vadd.f32 %v426, 1.0
  %v436 = vadd.f32 %v428, 1.0
  %v437 = vrcp.pop %v429
  %v438 = vmul.f32 1.0, %v437
  %v439 = vrcp.pop %v430
  %v440 = vmul.f32 1.0, %v439
  %v441 = vrcp.pop %v431
  %v442 = vmul.f32 1.0, %v441
  %v443 = vrcp.pop %v432
  %v444 = vmul.f32 1.0, %v443
  %v445 = vrcp.pop %v433
  %v446 = vmul.f32 1.0, %v445
  %v447 = vrcp.pop %v434
  %v448 = vmul.f32 1.0, %v447
  %v449 = vrcp.pop %v435
  %v450 = vmul.f32 1.0, %v449
  %v451 = vrcp.pop %v436
  %v452 = vmul.f32 1.0, %v451
  %v453 = vmul.f32 %v382, %v397
  %v454 = vmul.f32 %v384, %v398
  %v455 = vmul.f32 %v386, %v399
  %v456 = vmul.f32 %v388, %v400
  %v457 = vmul.f32 %v390, %v401
  %v458 = vmul.f32 %v392, %v402
  %v459 = vmul.f32 %v394, %v403
  %v460 = vmul.f32 %v396, %v404
  %v461 = vtanh.pop %v453
  %v462 = vtanh.pop %v454
  %v463 = vtanh.pop %v455
  %v464 = vtanh.pop %v456
  %v465 = vtanh.pop %v457
  %v466 = vtanh.pop %v458
  %v467 = vtanh.pop %v459
  %v468 = vtanh.pop %v460
  %v469 = vmul.f32 %v438, %v461
  %v470 = vmul.f32 %v440, %v462
  %v471 = vmul.f32 %v442, %v463
  %v472 = vmul.f32 %v444, %v464
  %v473 = vmul.f32 %v446, %v465
  %v474 = vmul.f32 %v448, %v466
  %v475 = vmul.f32 %v450, %v467
  %v476 = vmul.f32 %v452, %v468
  %v477 = vld [vmem:[%s3] sm:$0xf]
  %v478 = vld [vmem:[%s3 + $0x4] sm:$0xf]
  %v479 = vld [vmem:[%s3 + $0x8] sm:$0xf]
  %v480 = vld [vmem:[%s3 + $0xc] sm:$0xf]
  %v481 = vld [vmem:[%s3 + $0x10] sm:$0xf]
  %v482 = vld [vmem:[%s3 + $0x14] sm:$0xf]
  %v483 = vld [vmem:[%s3 + $0x18] sm:$0xf]
  %v484 = vld [vmem:[%s3 + $0x1c] sm:$0xf]
  %v485 = vld [vmem:[%s3 + $0x20] sm:$0xf]
  %v486 = vld [vmem:[%s3 + $0x24] sm:$0xf]
  %v487 = vld [vmem:[%s3 + $0x28] sm:$0xf]
  %v488 = vld [vmem:[%s3 + $0x2c] sm:$0xf]
  %v489 = vpack.c.bf16 %v471, %v469
  %v490 = vpack.c.bf16 %v472, %v470
  %v491 = vpack.c.bf16 %v475, %v473
  %v492 = vpack.c.bf16 %v476, %v474
  %v493 = vld [vmem:[%s4] sm:$0xff]
  %v494 = vld [vmem:[%s4 + $0x8] sm:$0xff]
  %v495 = vld [vmem:[%s4 + $0x10] sm:$0xff]
  %v496 = vld [vmem:[%s4 + $0x18] sm:$0xff]
  %v497 = vld [vmem:[%s4 + $0x20] sm:$0xff]
  %v498 = vld [vmem:[%s4 + $0x28] sm:$0xff]
  %v499 = vld [vmem:[%s4 + $0x30] sm:$0xff]
  %v500 = vld [vmem:[%s4 + $0x38] sm:$0xff]
  %v501 = vld [vmem:[%s4 + $0x40] sm:$0xff]
  %v502 = vld [vmem:[%s4 + $0x48] sm:$0xff]
  %v503 = vld [vmem:[%s4 + $0x50] sm:$0xff]
  %v504 = vld [vmem:[%s4 + $0x58] sm:$0xff]
  %506 = vset.pattern.permute.xlu0 0
  %507 = vperm.xlu0 %506, %v493
  %v508 = vpop.permute.xlu0 %507
  %511 = vset.pattern.permute.xlu0 0
  %512 = vperm.xlu0 %511, %v494
  %v513 = vpop.permute.xlu0 %512
  %516 = vset.pattern.permute.xlu0 0
  %517 = vperm.xlu0 %516, %v495
  %v518 = vpop.permute.xlu0 %517
  %521 = vset.pattern.permute.xlu0 0
  %522 = vperm.xlu0 %521, %v496
  %v523 = vpop.permute.xlu0 %522
  %526 = vset.pattern.permute.xlu0 0
  %527 = vperm.xlu0 %526, %v497
  %v528 = vpop.permute.xlu0 %527
  %531 = vset.pattern.permute.xlu0 0
  %532 = vperm.xlu0 %531, %v498
  %v533 = vpop.permute.xlu0 %532
  %536 = vset.pattern.permute.xlu0 0
  %537 = vperm.xlu0 %536, %v499
  %v538 = vpop.permute.xlu0 %537
  %541 = vset.pattern.permute.xlu0 0
  %542 = vperm.xlu0 %541, %v500
  %v543 = vpop.permute.xlu0 %542
  %546 = vset.pattern.permute.xlu0 0
  %547 = vperm.xlu0 %546, %v501
  %v548 = vpop.permute.xlu0 %547
  %551 = vset.pattern.permute.xlu0 0
  %552 = vperm.xlu0 %551, %v502
  %v553 = vpop.permute.xlu0 %552
  %556 = vset.pattern.permute.xlu0 0
  %557 = vperm.xlu0 %556, %v503
  %v558 = vpop.permute.xlu0 %557
  %561 = vset.pattern.permute.xlu0 0
  %562 = vperm.xlu0 %561, %v504
  %v563 = vpop.permute.xlu0 %562
  %v577 = vunpack.c.l.b16 %v477
  %v578 = vunpack.c.l.b16 %v478
  %v579 = vunpack.c.l.b16 %v479
  %v580 = vunpack.c.l.b16 %v480
  %v581 = vunpack.c.l.b16 %v481
  %v582 = vunpack.c.l.b16 %v482
  %v583 = vunpack.c.l.b16 %v483
  %v584 = vunpack.c.l.b16 %v484
  %v585 = vunpack.c.l.b16 %v485
  %v586 = vunpack.c.l.b16 %v486
  %v587 = vunpack.c.l.b16 %v487
  %v588 = vunpack.c.l.b16 %v488
  %v589 = vpack.c.b16 %v578, %v577
  %v590 = vpack.c.b16 %v580, %v579
  %v591 = vpack.c.b16 %v582, %v581
  %v592 = vpack.c.b16 %v584, %v583
  %v593 = vpack.c.b16 %v586, %v585
  %v594 = vpack.c.b16 %v588, %v587
  %vm595 = vcmask 261120
  %v597 = vsel %vm595, %v589, 0
  %v600 = vsel %vm595, %v590, 0
  %v603 = vsel %vm595, %v591, 0
  %v606 = vsel %vm595, %v592, 0
  %v609 = vsel %vm595, %v593, 0
  %v612 = vsel %vm595, %v594, 0
  %614 = vmatprep.subr.bf16.mxu0 0
  %615 = vmatpush1.bf16.msra.mxu0 0
  %616 = vmatprep.subr.bf16.mxu0 0
  %617 = vmatpush1.bf16.msra.mxu0 0
  %618 = vmatprep.subr.bf16.mxu0 0
  %619 = vmatpush1.bf16.msra.mxu0 0
  %620 = vmatprep.subr.bf16.mxu0 0
  %621 = vmatpush1.bf16.msra.mxu0 0
  %622 = vmatprep.subr.bf16.mxu0 0
  %623 = vmatpush1.bf16.msra.mxu0 0
  %624 = vmatprep.subr.bf16.mxu0 0
  %625 = vmatpush1.bf16.msra.mxu0 0
  %626 = vmatprep.subr.bf16.mxu0 %v492
  %627 = vmatpush1.bf16.msra.mxu0 %v491
  %628 = vmatprep.subr.bf16.mxu0 %v490
  %629 = vmatpush1.bf16.msra.mxu0 %v489
  %630 = vmatprep.subr.bf16.mxu0 0
  %631 = vmatpush2.bf16.msra.mxu0 0
  %632 = vmatprep.subr.bf16.mxu0 0
  %633 = vmatpush2.bf16.msra.mxu0 0
  %634 = vmatprep.subr.bf16.mxu0 0
  %635 = vmatpush2.bf16.msra.mxu0 0
  %636 = vmatprep.subr.bf16.mxu0 0
  %637 = vmatpush2.bf16.msra.mxu0 0
  %638 = vmatprep.subr.bf16.mxu0 0
  %639 = vmatpush2.bf16.msra.mxu0 0
  %640 = vmatprep.subr.bf16.mxu0 0
  %641 = vmatpush2.bf16.msra.mxu0 0
  %642 = vmatprep.subr.bf16.mxu0 0
  %643 = vmatpush2.bf16.msra.mxu0 0
  %644 = vmatprep.subr.bf16.mxu0 0
  %645 = vmatpush2.bf16.msra.mxu0 0
  %646 = vmatprep.mubr.bf16.mxu0 0
  %647 = vmatmul.mubr.bf16.gmra.mxu0 %v597
  %v648 = vpop.f32.mrf.mxu0
  %v649 = vadd.f32 %v508, %v648
  %v650 = vpop.f32.mrf.mxu0
  %v651 = vadd.f32 %v508, %v650
  %v652 = vpop.f32.mrf.mxu0
  %v653 = vadd.f32 %v513, %v652
  %v654 = vpop.f32.mrf.mxu0
  %v655 = vadd.f32 %v513, %v654
  %656 = vmatprep.mubr.bf16.mxu0 0
  %657 = vmatmul.mubr.bf16.gmra.mxu0 %v600
  %v658 = vpop.f32.mrf.mxu0
  %v659 = vadd.f32 %v518, %v658
  %v660 = vpop.f32.mrf.mxu0
  %v661 = vadd.f32 %v518, %v660
  %v662 = vpop.f32.mrf.mxu0
  %v663 = vadd.f32 %v523, %v662
  %v664 = vpop.f32.mrf.mxu0
  %v665 = vadd.f32 %v523, %v664
  %666 = vmatprep.mubr.bf16.mxu0 0
  %667 = vmatmul.mubr.bf16.gmra.mxu0 %v603
  %v668 = vpop.f32.mrf.mxu0
  %v669 = vadd.f32 %v528, %v668
  %v670 = vpop.f32.mrf.mxu0
  %v671 = vadd.f32 %v528, %v670
  %v672 = vpop.f32.mrf.mxu0
  %v673 = vadd.f32 %v533, %v672
  %v674 = vpop.f32.mrf.mxu0
  %v675 = vadd.f32 %v533, %v674
  %676 = vmatprep.mubr.bf16.mxu0 0
  %677 = vmatmul.mubr.bf16.gmra.mxu0 %v606
  %v678 = vpop.f32.mrf.mxu0
  %v679 = vadd.f32 %v538, %v678
  %v680 = vpop.f32.mrf.mxu0
  %v681 = vadd.f32 %v538, %v680
  %v682 = vpop.f32.mrf.mxu0
  %v683 = vadd.f32 %v543, %v682
  %v684 = vpop.f32.mrf.mxu0
  %v685 = vadd.f32 %v543, %v684
  %686 = vmatprep.mubr.bf16.mxu0 0
  %687 = vmatmul.mubr.bf16.gmra.mxu0 %v609
  %v688 = vpop.f32.mrf.mxu0
  %v689 = vadd.f32 %v548, %v688
  %v690 = vpop.f32.mrf.mxu0
  %v691 = vadd.f32 %v548, %v690
  %v692 = vpop.f32.mrf.mxu0
  %v693 = vadd.f32 %v553, %v692
  %v694 = vpop.f32.mrf.mxu0
  %v695 = vadd.f32 %v553, %v694
  %696 = vmatprep.mubr.bf16.mxu0 0
  %697 = vmatmul.mubr.bf16.gmra.mxu0 %v612
  %v698 = vpop.f32.mrf.mxu0
  %v699 = vadd.f32 %v558, %v698
  %v700 = vpop.f32.mrf.mxu0
  %v701 = vadd.f32 %v558, %v700
  %v702 = vpop.f32.mrf.mxu0
  %v703 = vadd.f32 %v563, %v702
  %v704 = vpop.f32.mrf.mxu0
  %v705 = vadd.f32 %v563, %v704
  %706 = vdwg.mxu0
  %v707 = vxor.u32 %v649, 2147483648
  %v708 = vxor.u32 %v651, 2147483648
  %v709 = vxor.u32 %v653, 2147483648
  %v710 = vxor.u32 %v655, 2147483648
  %v711 = vxor.u32 %v659, 2147483648
  %v712 = vxor.u32 %v661, 2147483648
  %v713 = vxor.u32 %v663, 2147483648
  %v714 = vxor.u32 %v665, 2147483648
  %v715 = vmul.f32 %v707, 1.442695
  %v716 = vpow.pop %v715
  %v717 = vmul.f32 %v708, 1.442695
  %v718 = vpow.pop %v717
  %v719 = vmul.f32 %v709, 1.442695
  %v720 = vpow.pop %v719
  %v721 = vmul.f32 %v710, 1.442695
  %v722 = vpow.pop %v721
  %v723 = vmul.f32 %v711, 1.442695
  %v724 = vpow.pop %v723
  %v725 = vmul.f32 %v712, 1.442695
  %v726 = vpow.pop %v725
  %v727 = vmul.f32 %v713, 1.442695
  %v728 = vpow.pop %v727
  %v729 = vmul.f32 %v714, 1.442695
  %v730 = vpow.pop %v729
  %v731 = vadd.f32 %v716, 1.0
  %v732 = vadd.f32 %v718, 1.0
  %v733 = vadd.f32 %v720, 1.0
  %v734 = vadd.f32 %v722, 1.0
  %v735 = vadd.f32 %v724, 1.0
  %v736 = vadd.f32 %v726, 1.0
  %v737 = vadd.f32 %v728, 1.0
  %v738 = vadd.f32 %v730, 1.0
  %v739 = vrcp.pop %v731
  %v740 = vmul.f32 1.0, %v739
  %v741 = vrcp.pop %v732
  %v742 = vmul.f32 1.0, %v741
  %v743 = vrcp.pop %v733
  %v744 = vmul.f32 1.0, %v743
  %v745 = vrcp.pop %v734
  %v746 = vmul.f32 1.0, %v745
  %v747 = vrcp.pop %v735
  %v748 = vmul.f32 1.0, %v747
  %v749 = vrcp.pop %v736
  %v750 = vmul.f32 1.0, %v749
  %v751 = vrcp.pop %v737
  %v752 = vmul.f32 1.0, %v751
  %v753 = vrcp.pop %v738
  %v754 = vmul.f32 1.0, %v753
  %v755 = vtanh.pop %v669
  %v756 = vtanh.pop %v671
  %v757 = vtanh.pop %v673
  %v758 = vtanh.pop %v675
  %v759 = vtanh.pop %v679
  %v760 = vtanh.pop %v681
  %v761 = vtanh.pop %v683
  %v762 = vtanh.pop %v685
  %v763 = vxor.u32 %v689, 2147483648
  %v764 = vxor.u32 %v691, 2147483648
  %v765 = vxor.u32 %v693, 2147483648
  %v766 = vxor.u32 %v695, 2147483648
  %v767 = vxor.u32 %v699, 2147483648
  %v768 = vxor.u32 %v701, 2147483648
  %v769 = vxor.u32 %v703, 2147483648
  %v770 = vxor.u32 %v705, 2147483648
  %v771 = vmul.f32 %v763, 1.442695
  %v772 = vpow.pop %v771
  %v773 = vmul.f32 %v764, 1.442695
  %v774 = vpow.pop %v773
  %v775 = vmul.f32 %v765, 1.442695
  %v776 = vpow.pop %v775
  %v777 = vmul.f32 %v766, 1.442695
  %v778 = vpow.pop %v777
  %v779 = vmul.f32 %v767, 1.442695
  %v780 = vpow.pop %v779
  %v781 = vmul.f32 %v768, 1.442695
  %v782 = vpow.pop %v781
  %v783 = vmul.f32 %v769, 1.442695
  %v784 = vpow.pop %v783
  %v785 = vmul.f32 %v770, 1.442695
  %v786 = vpow.pop %v785
  %v787 = vadd.f32 %v772, 1.0
  %v788 = vadd.f32 %v774, 1.0
  %v789 = vadd.f32 %v776, 1.0
  %v790 = vadd.f32 %v778, 1.0
  %v791 = vadd.f32 %v780, 1.0
  %v792 = vadd.f32 %v782, 1.0
  %v793 = vadd.f32 %v784, 1.0
  %v794 = vadd.f32 %v786, 1.0
  %v795 = vrcp.pop %v787
  %v796 = vmul.f32 1.0, %v795
  %v797 = vrcp.pop %v788
  %v798 = vmul.f32 1.0, %v797
  %v799 = vrcp.pop %v789
  %v800 = vmul.f32 1.0, %v799
  %v801 = vrcp.pop %v790
  %v802 = vmul.f32 1.0, %v801
  %v803 = vrcp.pop %v791
  %v804 = vmul.f32 1.0, %v803
  %v805 = vrcp.pop %v792
  %v806 = vmul.f32 1.0, %v805
  %v807 = vrcp.pop %v793
  %v808 = vmul.f32 1.0, %v807
  %v809 = vrcp.pop %v794
  %v810 = vmul.f32 1.0, %v809
  %v811 = vmul.f32 %v740, %v755
  %v812 = vmul.f32 %v742, %v756
  %v813 = vmul.f32 %v744, %v757
  %v814 = vmul.f32 %v746, %v758
  %v815 = vmul.f32 %v748, %v759
  %v816 = vmul.f32 %v750, %v760
  %v817 = vmul.f32 %v752, %v761
  %v818 = vmul.f32 %v754, %v762
  %v819 = vtanh.pop %v811
  %v820 = vtanh.pop %v812
  %v821 = vtanh.pop %v813
  %v822 = vtanh.pop %v814
  %v823 = vtanh.pop %v815
  %v824 = vtanh.pop %v816
  %v825 = vtanh.pop %v817
  %v826 = vtanh.pop %v818
  %v827 = vmul.f32 %v796, %v819
  %v828 = vmul.f32 %v798, %v820
  %v829 = vmul.f32 %v800, %v821
  %v830 = vmul.f32 %v802, %v822
  %v831 = vmul.f32 %v804, %v823
  %v832 = vmul.f32 %v806, %v824
  %v833 = vmul.f32 %v808, %v825
  %v834 = vmul.f32 %v810, %v826
  %v835 = vld [vmem:[%s5] sm:$0xf]
  %v836 = vld [vmem:[%s5 + $0x4] sm:$0xf]
  %v837 = vld [vmem:[%s5 + $0x8] sm:$0xf]
  %v838 = vld [vmem:[%s5 + $0xc] sm:$0xf]
  %v839 = vld [vmem:[%s5 + $0x10] sm:$0xf]
  %v840 = vld [vmem:[%s5 + $0x14] sm:$0xf]
  %v841 = vld [vmem:[%s5 + $0x18] sm:$0xf]
  %v842 = vld [vmem:[%s5 + $0x1c] sm:$0xf]
  %v843 = vld [vmem:[%s5 + $0x20] sm:$0xf]
  %v844 = vld [vmem:[%s5 + $0x24] sm:$0xf]
  %v845 = vld [vmem:[%s5 + $0x28] sm:$0xf]
  %v846 = vld [vmem:[%s5 + $0x2c] sm:$0xf]
  %v847 = vpack.c.bf16 %v829, %v827
  %v848 = vpack.c.bf16 %v830, %v828
  %v849 = vpack.c.bf16 %v833, %v831
  %v850 = vpack.c.bf16 %v834, %v832
  %v851 = vld [vmem:[%s6] sm:$0xff]
  %v852 = vld [vmem:[%s6 + $0x8] sm:$0xff]
  %v853 = vld [vmem:[%s6 + $0x10] sm:$0xff]
  %v854 = vld [vmem:[%s6 + $0x18] sm:$0xff]
  %v855 = vld [vmem:[%s6 + $0x20] sm:$0xff]
  %v856 = vld [vmem:[%s6 + $0x28] sm:$0xff]
  %v857 = vld [vmem:[%s6 + $0x30] sm:$0xff]
  %v858 = vld [vmem:[%s6 + $0x38] sm:$0xff]
  %v859 = vld [vmem:[%s6 + $0x40] sm:$0xff]
  %v860 = vld [vmem:[%s6 + $0x48] sm:$0xff]
  %v861 = vld [vmem:[%s6 + $0x50] sm:$0xff]
  %v862 = vld [vmem:[%s6 + $0x58] sm:$0xff]
  %864 = vset.pattern.permute.xlu0 0
  %865 = vperm.xlu0 %864, %v851
  %v866 = vpop.permute.xlu0 %865
  %869 = vset.pattern.permute.xlu0 0
  %870 = vperm.xlu0 %869, %v852
  %v871 = vpop.permute.xlu0 %870
  %874 = vset.pattern.permute.xlu0 0
  %875 = vperm.xlu0 %874, %v853
  %v876 = vpop.permute.xlu0 %875
  %879 = vset.pattern.permute.xlu0 0
  %880 = vperm.xlu0 %879, %v854
  %v881 = vpop.permute.xlu0 %880
  %884 = vset.pattern.permute.xlu0 0
  %885 = vperm.xlu0 %884, %v855
  %v886 = vpop.permute.xlu0 %885
  %889 = vset.pattern.permute.xlu0 0
  %890 = vperm.xlu0 %889, %v856
  %v891 = vpop.permute.xlu0 %890
  %894 = vset.pattern.permute.xlu0 0
  %895 = vperm.xlu0 %894, %v857
  %v896 = vpop.permute.xlu0 %895
  %899 = vset.pattern.permute.xlu0 0
  %900 = vperm.xlu0 %899, %v858
  %v901 = vpop.permute.xlu0 %900
  %904 = vset.pattern.permute.xlu0 0
  %905 = vperm.xlu0 %904, %v859
  %v906 = vpop.permute.xlu0 %905
  %909 = vset.pattern.permute.xlu0 0
  %910 = vperm.xlu0 %909, %v860
  %v911 = vpop.permute.xlu0 %910
  %914 = vset.pattern.permute.xlu0 0
  %915 = vperm.xlu0 %914, %v861
  %v916 = vpop.permute.xlu0 %915
  %919 = vset.pattern.permute.xlu0 0
  %920 = vperm.xlu0 %919, %v862
  %v921 = vpop.permute.xlu0 %920
  %v935 = vunpack.c.l.b16 %v835
  %v936 = vunpack.c.l.b16 %v836
  %v937 = vunpack.c.l.b16 %v837
  %v938 = vunpack.c.l.b16 %v838
  %v939 = vunpack.c.l.b16 %v839
  %v940 = vunpack.c.l.b16 %v840
  %v941 = vunpack.c.l.b16 %v841
  %v942 = vunpack.c.l.b16 %v842
  %v943 = vunpack.c.l.b16 %v843
  %v944 = vunpack.c.l.b16 %v844
  %v945 = vunpack.c.l.b16 %v845
  %v946 = vunpack.c.l.b16 %v846
  %v947 = vpack.c.b16 %v936, %v935
  %v948 = vpack.c.b16 %v938, %v937
  %v949 = vpack.c.b16 %v940, %v939
  %v950 = vpack.c.b16 %v942, %v941
  %v951 = vpack.c.b16 %v944, %v943
  %v952 = vpack.c.b16 %v946, %v945
  %v954 = vsel %vm595, %v947, 0
  %v957 = vsel %vm595, %v948, 0
  %v960 = vsel %vm595, %v949, 0
  %v963 = vsel %vm595, %v950, 0
  %v966 = vsel %vm595, %v951, 0
  %v969 = vsel %vm595, %v952, 0
  %971 = vmatprep.subr.bf16.mxu0 0
  %972 = vmatpush1.bf16.msra.mxu0 0
  %973 = vmatprep.subr.bf16.mxu0 0
  %974 = vmatpush1.bf16.msra.mxu0 0
  %975 = vmatprep.subr.bf16.mxu0 0
  %976 = vmatpush1.bf16.msra.mxu0 0
  %977 = vmatprep.subr.bf16.mxu0 0
  %978 = vmatpush1.bf16.msra.mxu0 0
  %979 = vmatprep.subr.bf16.mxu0 0
  %980 = vmatpush1.bf16.msra.mxu0 0
  %981 = vmatprep.subr.bf16.mxu0 0
  %982 = vmatpush1.bf16.msra.mxu0 0
  %983 = vmatprep.subr.bf16.mxu0 %v850
  %984 = vmatpush1.bf16.msra.mxu0 %v849
  %985 = vmatprep.subr.bf16.mxu0 %v848
  %986 = vmatpush1.bf16.msra.mxu0 %v847
  %987 = vmatprep.subr.bf16.mxu0 0
  %988 = vmatpush2.bf16.msra.mxu0 0
  %989 = vmatprep.subr.bf16.mxu0 0
  %990 = vmatpush2.bf16.msra.mxu0 0
  %991 = vmatprep.subr.bf16.mxu0 0
  %992 = vmatpush2.bf16.msra.mxu0 0
  %993 = vmatprep.subr.bf16.mxu0 0
  %994 = vmatpush2.bf16.msra.mxu0 0
  %995 = vmatprep.subr.bf16.mxu0 0
  %996 = vmatpush2.bf16.msra.mxu0 0
  %997 = vmatprep.subr.bf16.mxu0 0
  %998 = vmatpush2.bf16.msra.mxu0 0
  %999 = vmatprep.subr.bf16.mxu0 0
  %1000 = vmatpush2.bf16.msra.mxu0 0
  %1001 = vmatprep.subr.bf16.mxu0 0
  %1002 = vmatpush2.bf16.msra.mxu0 0
  %1003 = vmatprep.mubr.bf16.mxu0 0
  %1004 = vmatmul.mubr.bf16.gmra.mxu0 %v954
  %v1005 = vpop.f32.mrf.mxu0
  %v1006 = vadd.f32 %v866, %v1005
  %v1007 = vpop.f32.mrf.mxu0
  %v1008 = vadd.f32 %v866, %v1007
  %v1009 = vpop.f32.mrf.mxu0
  %v1010 = vadd.f32 %v871, %v1009
  %v1011 = vpop.f32.mrf.mxu0
  %v1012 = vadd.f32 %v871, %v1011
  %1013 = vmatprep.mubr.bf16.mxu0 0
  %1014 = vmatmul.mubr.bf16.gmra.mxu0 %v957
  %v1015 = vpop.f32.mrf.mxu0
  %v1016 = vadd.f32 %v876, %v1015
  %v1017 = vpop.f32.mrf.mxu0
  %v1018 = vadd.f32 %v876, %v1017
  %v1019 = vpop.f32.mrf.mxu0
  %v1020 = vadd.f32 %v881, %v1019
  %v1021 = vpop.f32.mrf.mxu0
  %v1022 = vadd.f32 %v881, %v1021
  %1023 = vmatprep.mubr.bf16.mxu0 0
  %1024 = vmatmul.mubr.bf16.gmra.mxu0 %v960
  %v1025 = vpop.f32.mrf.mxu0
  %v1026 = vadd.f32 %v886, %v1025
  %v1027 = vpop.f32.mrf.mxu0
  %v1028 = vadd.f32 %v886, %v1027
  %v1029 = vpop.f32.mrf.mxu0
  %v1030 = vadd.f32 %v891, %v1029
  %v1031 = vpop.f32.mrf.mxu0
  %v1032 = vadd.f32 %v891, %v1031
  %1033 = vmatprep.mubr.bf16.mxu0 0
  %1034 = vmatmul.mubr.bf16.gmra.mxu0 %v963
  %v1035 = vpop.f32.mrf.mxu0
  %v1036 = vadd.f32 %v896, %v1035
  %v1037 = vpop.f32.mrf.mxu0
  %v1038 = vadd.f32 %v896, %v1037
  %v1039 = vpop.f32.mrf.mxu0
  %v1040 = vadd.f32 %v901, %v1039
  %v1041 = vpop.f32.mrf.mxu0
  %v1042 = vadd.f32 %v901, %v1041
  %1043 = vmatprep.mubr.bf16.mxu0 0
  %1044 = vmatmul.mubr.bf16.gmra.mxu0 %v966
  %v1045 = vpop.f32.mrf.mxu0
  %v1046 = vadd.f32 %v906, %v1045
  %v1047 = vpop.f32.mrf.mxu0
  %v1048 = vadd.f32 %v906, %v1047
  %v1049 = vpop.f32.mrf.mxu0
  %v1050 = vadd.f32 %v911, %v1049
  %v1051 = vpop.f32.mrf.mxu0
  %v1052 = vadd.f32 %v911, %v1051
  %1053 = vmatprep.mubr.bf16.mxu0 0
  %1054 = vmatmul.mubr.bf16.gmra.mxu0 %v969
  %v1055 = vpop.f32.mrf.mxu0
  %v1056 = vadd.f32 %v916, %v1055
  %v1057 = vpop.f32.mrf.mxu0
  %v1058 = vadd.f32 %v916, %v1057
  %v1059 = vpop.f32.mrf.mxu0
  %v1060 = vadd.f32 %v921, %v1059
  %v1061 = vpop.f32.mrf.mxu0
  %v1062 = vadd.f32 %v921, %v1061
  %1063 = vdwg.mxu0
  %v1064 = vxor.u32 %v1006, 2147483648
  %v1065 = vxor.u32 %v1008, 2147483648
  %v1066 = vxor.u32 %v1010, 2147483648
  %v1067 = vxor.u32 %v1012, 2147483648
  %v1068 = vxor.u32 %v1016, 2147483648
  %v1069 = vxor.u32 %v1018, 2147483648
  %v1070 = vxor.u32 %v1020, 2147483648
  %v1071 = vxor.u32 %v1022, 2147483648
  %v1072 = vmul.f32 %v1064, 1.442695
  %v1073 = vpow.pop %v1072
  %v1074 = vmul.f32 %v1065, 1.442695
  %v1075 = vpow.pop %v1074
  %v1076 = vmul.f32 %v1066, 1.442695
  %v1077 = vpow.pop %v1076
  %v1078 = vmul.f32 %v1067, 1.442695
  %v1079 = vpow.pop %v1078
  %v1080 = vmul.f32 %v1068, 1.442695
  %v1081 = vpow.pop %v1080
  %v1082 = vmul.f32 %v1069, 1.442695
  %v1083 = vpow.pop %v1082
  %v1084 = vmul.f32 %v1070, 1.442695
  %v1085 = vpow.pop %v1084
  %v1086 = vmul.f32 %v1071, 1.442695
  %v1087 = vpow.pop %v1086
  %v1088 = vadd.f32 %v1073, 1.0
  %v1089 = vadd.f32 %v1075, 1.0
  %v1090 = vadd.f32 %v1077, 1.0
  %v1091 = vadd.f32 %v1079, 1.0
  %v1092 = vadd.f32 %v1081, 1.0
  %v1093 = vadd.f32 %v1083, 1.0
  %v1094 = vadd.f32 %v1085, 1.0
  %v1095 = vadd.f32 %v1087, 1.0
  %v1096 = vrcp.pop %v1088
  %v1097 = vmul.f32 1.0, %v1096
  %v1098 = vrcp.pop %v1089
  %v1099 = vmul.f32 1.0, %v1098
  %v1100 = vrcp.pop %v1090
  %v1101 = vmul.f32 1.0, %v1100
  %v1102 = vrcp.pop %v1091
  %v1103 = vmul.f32 1.0, %v1102
  %v1104 = vrcp.pop %v1092
  %v1105 = vmul.f32 1.0, %v1104
  %v1106 = vrcp.pop %v1093
  %v1107 = vmul.f32 1.0, %v1106
  %v1108 = vrcp.pop %v1094
  %v1109 = vmul.f32 1.0, %v1108
  %v1110 = vrcp.pop %v1095
  %v1111 = vmul.f32 1.0, %v1110
  %v1112 = vtanh.pop %v1026
  %v1113 = vtanh.pop %v1028
  %v1114 = vtanh.pop %v1030
  %v1115 = vtanh.pop %v1032
  %v1116 = vtanh.pop %v1036
  %v1117 = vtanh.pop %v1038
  %v1118 = vtanh.pop %v1040
  %v1119 = vtanh.pop %v1042
  %v1120 = vxor.u32 %v1046, 2147483648
  %v1121 = vxor.u32 %v1048, 2147483648
  %v1122 = vxor.u32 %v1050, 2147483648
  %v1123 = vxor.u32 %v1052, 2147483648
  %v1124 = vxor.u32 %v1056, 2147483648
  %v1125 = vxor.u32 %v1058, 2147483648
  %v1126 = vxor.u32 %v1060, 2147483648
  %v1127 = vxor.u32 %v1062, 2147483648
  %v1128 = vmul.f32 %v1120, 1.442695
  %v1129 = vpow.pop %v1128
  %v1130 = vmul.f32 %v1121, 1.442695
  %v1131 = vpow.pop %v1130
  %v1132 = vmul.f32 %v1122, 1.442695
  %v1133 = vpow.pop %v1132
  %v1134 = vmul.f32 %v1123, 1.442695
  %v1135 = vpow.pop %v1134
  %v1136 = vmul.f32 %v1124, 1.442695
  %v1137 = vpow.pop %v1136
  %v1138 = vmul.f32 %v1125, 1.442695
  %v1139 = vpow.pop %v1138
  %v1140 = vmul.f32 %v1126, 1.442695
  %v1141 = vpow.pop %v1140
  %v1142 = vmul.f32 %v1127, 1.442695
  %v1143 = vpow.pop %v1142
  %v1144 = vadd.f32 %v1129, 1.0
  %v1145 = vadd.f32 %v1131, 1.0
  %v1146 = vadd.f32 %v1133, 1.0
  %v1147 = vadd.f32 %v1135, 1.0
  %v1148 = vadd.f32 %v1137, 1.0
  %v1149 = vadd.f32 %v1139, 1.0
  %v1150 = vadd.f32 %v1141, 1.0
  %v1151 = vadd.f32 %v1143, 1.0
  %v1152 = vrcp.pop %v1144
  %v1153 = vmul.f32 1.0, %v1152
  %v1154 = vrcp.pop %v1145
  %v1155 = vmul.f32 1.0, %v1154
  %v1156 = vrcp.pop %v1146
  %v1157 = vmul.f32 1.0, %v1156
  %v1158 = vrcp.pop %v1147
  %v1159 = vmul.f32 1.0, %v1158
  %v1160 = vrcp.pop %v1148
  %v1161 = vmul.f32 1.0, %v1160
  %v1162 = vrcp.pop %v1149
  %v1163 = vmul.f32 1.0, %v1162
  %v1164 = vrcp.pop %v1150
  %v1165 = vmul.f32 1.0, %v1164
  %v1166 = vrcp.pop %v1151
  %v1167 = vmul.f32 1.0, %v1166
  %v1168 = vmul.f32 %v1097, %v1112
  %v1169 = vmul.f32 %v1099, %v1113
  %v1170 = vmul.f32 %v1101, %v1114
  %v1171 = vmul.f32 %v1103, %v1115
  %v1172 = vmul.f32 %v1105, %v1116
  %v1173 = vmul.f32 %v1107, %v1117
  %v1174 = vmul.f32 %v1109, %v1118
  %v1175 = vmul.f32 %v1111, %v1119
  %v1176 = vtanh.pop %v1168
  %v1177 = vtanh.pop %v1169
  %v1178 = vtanh.pop %v1170
  %v1179 = vtanh.pop %v1171
  %v1180 = vtanh.pop %v1172
  %v1181 = vtanh.pop %v1173
  %v1182 = vtanh.pop %v1174
  %v1183 = vtanh.pop %v1175
  %v1184 = vmul.f32 %v1153, %v1176
  %v1185 = vmul.f32 %v1155, %v1177
  %v1186 = vmul.f32 %v1157, %v1178
  %v1187 = vmul.f32 %v1159, %v1179
  %v1188 = vmul.f32 %v1161, %v1180
  %v1189 = vmul.f32 %v1163, %v1181
  %v1190 = vmul.f32 %v1165, %v1182
  %v1191 = vmul.f32 %v1167, %v1183
  %1192 = vxpose.xlu0.b32.start [1/16] %v1184, 128
  %1193 = vxpose.xlu0.b32.cont [2/16] %v1186, 128
  %1194 = vxpose.xlu0.b32.cont [3/16] %v1188, 128
  %1195 = vxpose.xlu0.b32.cont [4/16] %v1190, 128
  %1196 = vxpose.xlu0.b32.cont [5/16] 0.0, 128
  %1197 = vxpose.xlu0.b32.cont [6/16] 0.0, 128
  %1198 = vxpose.xlu0.b32.cont [7/16] 0.0, 128
  %1199 = vxpose.xlu0.b32.cont [8/16] 0.0, 128
  %1200 = vxpose.xlu0.b32.cont [9/16] 0.0, 128
  %1201 = vxpose.xlu0.b32.cont [10/16] 0.0, 128
  %1202 = vxpose.xlu0.b32.cont [11/16] 0.0, 128
  %1203 = vxpose.xlu0.b32.cont [12/16] 0.0, 128
  %1204 = vxpose.xlu0.b32.cont [13/16] 0.0, 128
  %1205 = vxpose.xlu0.b32.cont [14/16] 0.0, 128
  %1206 = vxpose.xlu0.b32.cont [15/16] 0.0, 128
  %1207 = vxpose.xlu0.b32.end [16/16] 0.0, 128
  %v1208 = vpop.trf.xlu0
  %v1209 = vpop.trf.xlu0
  %v1210 = vpop.trf.xlu0
  %v1211 = vpop.trf.xlu0
  %v1212 = vpop.trf.xlu0
  %v1213 = vpop.trf.xlu0
  %v1214 = vpop.trf.xlu0
  %v1215 = vpop.trf.xlu0
  %v1216 = vpop.trf.xlu0
  %v1217 = vpop.trf.xlu0
  %v1218 = vpop.trf.xlu0
  %v1219 = vpop.trf.xlu0
  %v1220 = vpop.trf.xlu0
  %v1221 = vpop.trf.xlu0
  %v1222 = vpop.trf.xlu0
  %v1223 = vpop.trf.xlu0
  %1224 = vxpose.xlu0.b32.start [1/16] %v1185, 128
  %1225 = vxpose.xlu0.b32.cont [2/16] %v1187, 128
  %1226 = vxpose.xlu0.b32.cont [3/16] %v1189, 128
  %1227 = vxpose.xlu0.b32.cont [4/16] %v1191, 128
  %1228 = vxpose.xlu0.b32.cont [5/16] 0.0, 128
  %1229 = vxpose.xlu0.b32.cont [6/16] 0.0, 128
  %1230 = vxpose.xlu0.b32.cont [7/16] 0.0, 128
  %1231 = vxpose.xlu0.b32.cont [8/16] 0.0, 128
  %1232 = vxpose.xlu0.b32.cont [9/16] 0.0, 128
  %1233 = vxpose.xlu0.b32.cont [10/16] 0.0, 128
  %1234 = vxpose.xlu0.b32.cont [11/16] 0.0, 128
  %1235 = vxpose.xlu0.b32.cont [12/16] 0.0, 128
  %1236 = vxpose.xlu0.b32.cont [13/16] 0.0, 128
  %1237 = vxpose.xlu0.b32.cont [14/16] 0.0, 128
  %1238 = vxpose.xlu0.b32.cont [15/16] 0.0, 128
  %1239 = vxpose.xlu0.b32.end [16/16] 0.0, 128
  %v1240 = vpop.trf.xlu0
  %v1241 = vpop.trf.xlu0
  %v1242 = vpop.trf.xlu0
  %v1243 = vpop.trf.xlu0
  %v1244 = vpop.trf.xlu0
  %v1245 = vpop.trf.xlu0
  %v1246 = vpop.trf.xlu0
  %v1247 = vpop.trf.xlu0
  %v1248 = vpop.trf.xlu0
  %v1249 = vpop.trf.xlu0
  %v1250 = vpop.trf.xlu0
  %v1251 = vpop.trf.xlu0
  %v1252 = vpop.trf.xlu0
  %v1253 = vpop.trf.xlu0
  %v1254 = vpop.trf.xlu0
  %v1255 = vpop.trf.xlu0
  %1256 = vst.msk [vmem:[%s7] sm:$0xff] %vm595, %v1208
  %1257 = vst.msk [vmem:[%s7 + $0x8] sm:$0xff] %vm595, %v1209
  %1258 = vst.msk [vmem:[%s7 + $0x10] sm:$0xff] %vm595, %v1210
  %1259 = vst.msk [vmem:[%s7 + $0x18] sm:$0xff] %vm595, %v1211
  %1260 = vst.msk [vmem:[%s7 + $0x20] sm:$0xff] %vm595, %v1212
  %1261 = vst.msk [vmem:[%s7 + $0x28] sm:$0xff] %vm595, %v1213
  %1262 = vst.msk [vmem:[%s7 + $0x30] sm:$0xff] %vm595, %v1214
  %1263 = vst.msk [vmem:[%s7 + $0x38] sm:$0xff] %vm595, %v1215
  %1264 = vst.msk [vmem:[%s7 + $0x40] sm:$0xff] %vm595, %v1216
  %1265 = vst.msk [vmem:[%s7 + $0x48] sm:$0xff] %vm595, %v1217
  %1266 = vst.msk [vmem:[%s7 + $0x50] sm:$0xff] %vm595, %v1218
  %1267 = vst.msk [vmem:[%s7 + $0x58] sm:$0xff] %vm595, %v1219
  %1268 = vst.msk [vmem:[%s7 + $0x60] sm:$0xff] %vm595, %v1220
  %1269 = vst.msk [vmem:[%s7 + $0x68] sm:$0xff] %vm595, %v1221
  %1270 = vst.msk [vmem:[%s7 + $0x70] sm:$0xff] %vm595, %v1222
  %1271 = vst.msk [vmem:[%s7 + $0x78] sm:$0xff] %vm595, %v1223
  %1272 = vst.msk [vmem:[%s7 + $0x80] sm:$0xff] %vm595, %v1240
  %1273 = vst.msk [vmem:[%s7 + $0x88] sm:$0xff] %vm595, %v1241
  %1274 = vst.msk [vmem:[%s7 + $0x90] sm:$0xff] %vm595, %v1242
  %1275 = vst.msk [vmem:[%s7 + $0x98] sm:$0xff] %vm595, %v1243
  %1276 = vst.msk [vmem:[%s7 + $0xa0] sm:$0xff] %vm595, %v1244
  %1277 = vst.msk [vmem:[%s7 + $0xa8] sm:$0xff] %vm595, %v1245
  %1278 = vst.msk [vmem:[%s7 + $0xb0] sm:$0xff] %vm595, %v1246
  %1279 = vst.msk [vmem:[%s7 + $0xb8] sm:$0xff] %vm595, %v1247
  %1280 = vst.msk [vmem:[%s7 + $0xc0] sm:$0xff] %vm595, %v1248
  %1281 = vst.msk [vmem:[%s7 + $0xc8] sm:$0xff] %vm595, %v1249
  %1282 = vst.msk [vmem:[%s7 + $0xd0] sm:$0xff] %vm595, %v1250
  %1283 = vst.msk [vmem:[%s7 + $0xd8] sm:$0xff] %vm595, %v1251
  %1284 = vst.msk [vmem:[%s7 + $0xe0] sm:$0xff] %vm595, %v1252
  %1285 = vst.msk [vmem:[%s7 + $0xe8] sm:$0xff] %vm595, %v1253
  %1286 = vst.msk [vmem:[%s7 + $0xf0] sm:$0xff] %vm595, %v1254
  %1287 = vst.msk [vmem:[%s7 + $0xf8] sm:$0xff] %vm595, %v1255
  // Predicated region
  $region30: #{tpu_custom_call.1} parent=0 // pred_check
    _
  $region31: #{tpu_custom_call.1} parent=0 // pred_check_branch
    %1289 = sbr.rel (0) target = $region33
  $region32: #{tpu_custom_call.1} parent=0 // pred_region
    _
  $region33: #{tpu_custom_call.1} parent=0 // pred_fallthru
    _
  // Predicated region
  $region34: #{tpu_custom_call.1} parent=0 // pred_check
    _
  $region35: #{tpu_custom_call.1} parent=0 // pred_check_branch
    %1291 = sbr.rel (0) target = $region37
  $region36: #{tpu_custom_call.1} parent=0 // pred_region
    _
  $region37: #{tpu_custom_call.1} parent=0 // pred_fallthru
    _

</llo_original>
